<compile_context>
chip_gen: v7x
topology: tpu7x:2x2x1
jax: 0.10.0
libtpu: 0.0.40
codegen_flags: <defaults>
</compile_context>

<pallas_src>
import jax
import jax.numpy as jnp
from jax import lax
from jax.experimental import pallas as pl
from jax.experimental.pallas import tpu as pltpu


# ---------------- the Pallas kernel ----------------

def _residual_head_kernel(q_ref, r_ref, rv_ref, p_ref, out_ref):
    # q_ref  : (B, D) f32   query representations
    # r_ref  : (K, D) f32   reference bank
    # rv_ref : (B, K) f32   reference values
    # p_ref  : (2D+4H+20, L) f32  packed parameter slab (see pack_params)
    # out_ref: (B, 1) f32   predictions (column; reshaped to (B,) in wrapper)
    f32, bf16 = jnp.float32, jnp.bfloat16

    D = q_ref.shape[1]
    K = r_ref.shape[0]
    H = (p_ref.shape[0] - 2 * D - 20) // 4
    V0 = 2 * D + 4 * H            # first row of the vector section

    def vec(i, w):                # single packed vector row -> (1, w)
        return p_ref[V0 + i:V0 + i + 1, :w]

    def ln(x, g, b, eps=1e-5):    # standard LayerNorm (biased var, as PyTorch)
        mu = jnp.mean(x, axis=-1, keepdims=True)
        cen = x - mu
        var = jnp.mean(cen * cen, axis=-1, keepdims=True)
        return cen * lax.rsqrt(var + eps) * g + b

    def gelu(x):                  # exact (erf) GELU, matching nn.GELU() default
        return 0.5 * x * (1.0 + lax.erf(x * 0.7071067811865476))

    def chain(x, w_off, v_off):
        # 3-layer projection: LN -> Linear -> GELU -> Linear -> GELU -> Linear -> LN
        # TODO(synk): nn.Dropout inside the projection is treated as identity (eval mode).
        w1 = p_ref[w_off:w_off + D, :H]
        w2 = p_ref[w_off + D:w_off + D + H, :H]
        w3 = p_ref[w_off + D + H:w_off + D + 2 * H, :H]
        h = ln(x, vec(v_off + 0, D), vec(v_off + 1, D))
        h = gelu(jnp.dot(h.astype(bf16), w1.astype(bf16),
                         preferred_element_type=f32) + vec(v_off + 2, H))
        h = gelu(jnp.dot(h.astype(bf16), w2.astype(bf16),
                         preferred_element_type=f32) + vec(v_off + 3, H))
        h = jnp.dot(h.astype(bf16), w3.astype(bf16),
                    preferred_element_type=f32) + vec(v_off + 4, H)
        return ln(h, vec(v_off + 5, H), vec(v_off + 6, H))

    q_proj = chain(q_ref[...], 0, 0)              # (B, H); carries folded 1/sqrt(H)
    r_proj = chain(r_ref[...], D + 2 * H, 7)      # (K, H)

    # scores[b, k] = <q_proj[b], r_proj[k]>  (1/sqrt(H) already folded into q_proj);
    # tiny dot -> run in f32 for accuracy.
    scores = lax.dot_general(q_proj, r_proj,
                             dimension_numbers=(((1,), (1,)), ((), ())),
                             preferred_element_type=f32)     # (B, K)

    # softmax over the reference bank (tau = 1); exact division for fidelity.
    s = scores - jnp.max(scores, axis=-1, keepdims=True)
    e = jnp.exp(s)
    w = e / jnp.sum(e, axis=-1, keepdims=True)

    rv = rv_ref[...]                                          # (B, K)
    base = jnp.sum(w * rv, axis=-1, keepdims=True)            # (B, 1)

    # --- group_logit_temp scaling ---
    # TODO(synk): torch.std uses ddof=1; K == 1 would produce inf/NaN (same as PyTorch).
    mean_v = jnp.mean(rv, axis=-1, keepdims=True)                           # (B, 1)
    var_u = jnp.sum((rv - mean_v) ** 2, axis=-1, keepdims=True) / (K - 1)
    std_v = jnp.sqrt(var_u)

    mw1a, mw1b, mb1 = vec(14, 10), vec(15, 10), vec(16, 10)
    mw2a, mw2b, mb2 = vec(17, 10), vec(18, 10), vec(19, 10)

    h1 = jnp.maximum(mean_v * mw1a + std_v * mw1b + mb1, 0.0)               # (B, 10)
    temp_raw = jnp.sum(h1 * mw2a, axis=-1, keepdims=True) + mb2[0:1, 0:1]
    bias_raw = jnp.sum(h1 * mw2b, axis=-1, keepdims=True) + mb2[0:1, 1:2]

    softplus = jnp.maximum(temp_raw, 0.0) + jnp.log1p(jnp.exp(-jnp.abs(temp_raw)))
    temp = jnp.clip(softplus, 0.01, 10.0)
    bias = jnp.tanh(bias_raw)

    p = jnp.clip(base, 1e-4, 1.0 - 1e-4)
    logit = jnp.log(p) - jnp.log1p(-p)                        # torch.logit
    z = logit / temp + bias
    out_ref[...] = 1.0 / (1.0 + jnp.exp(-z))                  # exact sigmoid, (B, 1)


# ---------------- parameter init & packing ----------------

def init_params(key, input_size, hidden_size):
    """PyTorch-layout parameters (nn.Linear default init), as a nested dict."""
    def linear(k, fan_in, fan_out):
        k1, k2 = jax.random.split(k)
        bound = 1.0 / (fan_in ** 0.5)
        w = jax.random.uniform(k1, (fan_in, fan_out), jnp.float32, -bound, bound)
        b = jax.random.uniform(k2, (fan_out,), jnp.float32, -bound, bound)
        return w, b

    def proj(k, d, h):
        ks = jax.random.split(k, 3)
        w1, b1 = linear(ks[0], d, h)
        w2, b2 = linear(ks[1], h, h)
        w3, b3 = linear(ks[2], h, h)
        return dict(ln1_g=jnp.ones((d,), jnp.float32), ln1_b=jnp.zeros((d,), jnp.float32),
                    w1=w1, b1=b1, w2=w2, b2=b2, w3=w3, b3=b3,
                    ln2_g=jnp.ones((h,), jnp.float32), ln2_b=jnp.zeros((h,), jnp.float32))

    kq, kr, km1, km2 = jax.random.split(key, 4)
    mw1, mb1 = linear(km1, 2, 10)
    mw2, mb2 = linear(km2, 10, 2)
    return dict(q=proj(kq, input_size, hidden_size),
                r=proj(kr, input_size, hidden_size),
                mw1=mw1, mb1=mb1, mw2=mw2, mb2=mb2)


def pack_params(p):
    """Pack ALL parameters into a single f32 slab of shape (2D+4H+20, L),
    L = max(D, H, 10).  Weight blocks are stacked along rows (sublane-aligned
    when D, H are multiples of 8); the 1/sqrt(H) score scale is folded into the
    query-side final-LN gamma/beta.  Row layout (after the 6 weight blocks):
      +0..6  : q ln1_g, ln1_b, b1, b2, b3, ln2_g*s, ln2_b*s
      +7..13 : r ln1_g, ln1_b, b1, b2, b3, ln2_g,   ln2_b
      +14..19: mw1 (2 rows), mb1, mw2^T (2 rows), mb2 (padded)
    """
    q, r = p["q"], p["r"]
    D, H = q["w1"].shape
    L = max(D, H, 10)
    inv_sqrt_h = 1.0 / (float(H) ** 0.5)

    def pad_vec(v):
        return jnp.pad(v, (0, L - v.shape[0]))[None, :]

    def pad_mat(w):
        return jnp.pad(w, ((0, 0), (0, L - w.shape[1])))

    rows = [
        pad_mat(q["w1"]), pad_mat(q["w2"]), pad_mat(q["w3"]),
        pad_mat(r["w1"]), pad_mat(r["w2"]), pad_mat(r["w3"]),
        pad_vec(q["ln1_g"]), pad_vec(q["ln1_b"]),
        pad_vec(q["b1"]), pad_vec(q["b2"]), pad_vec(q["b3"]),
        pad_vec(q["ln2_g"] * inv_sqrt_h), pad_vec(q["ln2_b"] * inv_sqrt_h),
        pad_vec(r["ln1_g"]), pad_vec(r["ln1_b"]),
        pad_vec(r["b1"]), pad_vec(r["b2"]), pad_vec(r["b3"]),
        pad_vec(r["ln2_g"]), pad_vec(r["ln2_b"]),
        pad_mat(p["mw1"]),        # (2, 10)
        pad_vec(p["mb1"]),        # (1, 10)
        pad_mat(p["mw2"].T),      # (2, 10)
        pad_vec(p["mb2"]),        # (1, 2) padded
    ]
    return jnp.concatenate(rows, axis=0).astype(jnp.float32)


# ---------------- wrapper ----------------

def residual_head(query, ref, ref_values, param_slab):
    B, D = query.shape
    out = pl.pallas_call(
        _residual_head_kernel,
        out_shape=jax.ShapeDtypeStruct((B, 1), jnp.float32),
        in_specs=[pl.BlockSpec(memory_space=pltpu.MemorySpace.VMEM)] * 4,
        out_specs=pl.BlockSpec(memory_space=pltpu.MemorySpace.VMEM),
    )(query, ref, ref_values, param_slab)
    return out[:, 0]


# ---------------- plain-JAX f32 reference (PyTorch-faithful) ----------------

def _reference(query, ref, rv, p):
    def ln(x, g, b, eps=1e-5):
        mu = jnp.mean(x, -1, keepdims=True)
        var = jnp.mean((x - mu) ** 2, -1, keepdims=True)
        return (x - mu) * lax.rsqrt(var + eps) * g + b

    def gelu(x):
        return 0.5 * x * (1.0 + lax.erf(x * 0.7071067811865476))

    def proj(x, pp):
        h = ln(x, pp["ln1_g"], pp["ln1_b"])
        h = gelu(h @ pp["w1"] + pp["b1"])
        h = gelu(h @ pp["w2"] + pp["b2"])
        h = h @ pp["w3"] + pp["b3"]
        return ln(h, pp["ln2_g"], pp["ln2_b"])

    qp = proj(query, p["q"])
    rp = proj(ref, p["r"])
    H = qp.shape[-1]
    scores = (qp @ rp.T) / (float(H) ** 0.5)
    w = jax.nn.softmax(scores, axis=-1)
    base = jnp.sum(w * rv, axis=-1)

    mean_v = jnp.mean(rv, axis=-1)
    std_v = jnp.std(rv, axis=-1, ddof=1)
    h1 = jax.nn.relu(jnp.stack([mean_v, std_v], axis=-1) @ p["mw1"] + p["mb1"])
    tb = h1 @ p["mw2"] + p["mb2"]
    temp = jnp.clip(jax.nn.softplus(tb[:, 0]), 0.01, 10.0)
    bias = jnp.tanh(tb[:, 1])
    pc = jnp.clip(base, 1e-4, 1.0 - 1e-4)
    logit = jnp.log(pc) - jnp.log1p(-pc)
    return jax.nn.sigmoid(logit / temp + bias)


if __name__ == "__main__":
    B, K, D, H = 4, 8, 32, 32

    key = jax.random.PRNGKey(0)
    k_q, k_r, k_v, k_p = jax.random.split(key, 4)

    query_input = jax.random.normal(k_q, (B, D), jnp.float32)
    ref_input = jax.random.normal(k_r, (K, D), jnp.float32)
    ref_values = jax.random.uniform(k_v, (B, K), jnp.float32)

    params = init_params(k_p, D, H)
    slab = pack_params(params)

    pred = residual_head(query_input, ref_input, ref_values, slab)
    jax.block_until_ready(pred)

    assert pred.shape == (B,)
    assert bool(jnp.all(jnp.isfinite(pred)))

    # faithfulness check vs. f32 unfused reference (only bf16-at-the-dot drift remains)
    ref_pred = _reference(query_input, ref_input, ref_values, params)
    assert bool(jnp.max(jnp.abs(pred - ref_pred)) < 5e-2)

    print("KERNEL_OK")
</pallas_src>

<mosaic_0001>
module attributes {stable_mosaic.version = 11 : i64} {
  func.func @_residual_head_kernel(%arg0: memref<4x32xf32, #tpu.memory_space<vmem>>, %arg1: memref<8x32xf32, #tpu.memory_space<vmem>>, %arg2: memref<4x8xf32, #tpu.memory_space<vmem>>, %arg3: memref<212x32xf32, #tpu.memory_space<vmem>>, %arg4: memref<4x1xf32, #tpu.memory_space<vmem>>) attributes {dimension_semantics = [], scalar_prefetch = 0 : i64, scratch_operands = 0 : i64, tpu.core_type = #tpu.core_type<tc>} {
    %c0 = arith.constant 0 : index
    %c0_0 = arith.constant 0 : index
    %0 = vector.load %arg0[%c0, %c0_0] : memref<4x32xf32, #tpu.memory_space<vmem>>, vector<4x32xf32>
    %c0_1 = arith.constant 0 : index
    %c0_2 = arith.constant 0 : index
    %1 = vector.load %arg3[%c0_1, %c0_2] : memref<212x32xf32, #tpu.memory_space<vmem>>, vector<32x32xf32>
    %c32 = arith.constant 32 : index
    %c0_3 = arith.constant 0 : index
    %2 = vector.load %arg3[%c32, %c0_3] : memref<212x32xf32, #tpu.memory_space<vmem>>, vector<32x32xf32>
    %c64 = arith.constant 64 : index
    %c0_4 = arith.constant 0 : index
    %3 = vector.load %arg3[%c64, %c0_4] : memref<212x32xf32, #tpu.memory_space<vmem>>, vector<32x32xf32>
    %c192 = arith.constant 192 : index
    %c0_5 = arith.constant 0 : index
    %4 = vector.load %arg3[%c192, %c0_5] : memref<212x32xf32, #tpu.memory_space<vmem>>, vector<1x32xf32>
    %c193 = arith.constant 193 : index
    %c0_6 = arith.constant 0 : index
    %5 = vector.load %arg3[%c193, %c0_6] : memref<212x32xf32, #tpu.memory_space<vmem>>, vector<1x32xf32>
    %cst = arith.constant dense<0.000000e+00> : vector<4xf32>
    %6 = vector.multi_reduction <add>, %0, %cst [1] : vector<4x32xf32> to vector<4xf32>
    %7 = vector.shape_cast %6 : vector<4xf32> to vector<4x1xf32>
    %cst_7 = arith.constant 3.200000e+01 : f32
    %8 = vector.broadcast %cst_7 : f32 to vector<4x1xf32>
    %9 = arith.divf %7, %8 : vector<4x1xf32>
    %10 = vector.broadcast %9 : vector<4x1xf32> to vector<4x32xf32>
    %11 = arith.subf %0, %10 : vector<4x32xf32>
    %12 = arith.mulf %11, %11 : vector<4x32xf32>
    %cst_8 = arith.constant dense<0.000000e+00> : vector<4xf32>
    %13 = vector.multi_reduction <add>, %12, %cst_8 [1] : vector<4x32xf32> to vector<4xf32>
    %14 = vector.shape_cast %13 : vector<4xf32> to vector<4x1xf32>
    %cst_9 = arith.constant 3.200000e+01 : f32
    %15 = vector.broadcast %cst_9 : f32 to vector<4x1xf32>
    %16 = arith.divf %14, %15 : vector<4x1xf32>
    %cst_10 = arith.constant 9.99999974E-6 : f32
    %17 = vector.broadcast %cst_10 : f32 to vector<4x1xf32>
    %18 = arith.addf %16, %17 : vector<4x1xf32>
    %19 = math.rsqrt %18 : vector<4x1xf32>
    %20 = vector.broadcast %19 : vector<4x1xf32> to vector<4x32xf32>
    %21 = arith.mulf %11, %20 : vector<4x32xf32>
    %22 = vector.broadcast %4 : vector<1x32xf32> to vector<4x32xf32>
    %23 = arith.mulf %21, %22 : vector<4x32xf32>
    %24 = vector.broadcast %5 : vector<1x32xf32> to vector<4x32xf32>
    %25 = arith.addf %23, %24 : vector<4x32xf32>
    %26 = arith.truncf %25 : vector<4x32xf32> to vector<4x32xbf16>
    %27 = arith.truncf %1 : vector<32x32xf32> to vector<32x32xbf16>
    %cst_11 = arith.constant dense<0.000000e+00> : vector<4x32xf32>
    %28 = tpu.matmul %26, %27, %cst_11 {dimension_numbers = #tpu.dot_dimension_numbers<[1], [0], [0], [1], [0, 0, 1, 1], [], []>} : vector<4x32xbf16>, vector<32x32xbf16>, vector<4x32xf32> -> vector<4x32xf32>
    %c194 = arith.constant 194 : index
    %c0_12 = arith.constant 0 : index
    %29 = vector.load %arg3[%c194, %c0_12] : memref<212x32xf32, #tpu.memory_space<vmem>>, vector<1x32xf32>
    %30 = vector.broadcast %29 : vector<1x32xf32> to vector<4x32xf32>
    %31 = arith.addf %28, %30 : vector<4x32xf32>
    %cst_13 = arith.constant 5.000000e-01 : f32
    %32 = vector.broadcast %cst_13 : f32 to vector<4x32xf32>
    %33 = arith.mulf %32, %31 : vector<4x32xf32>
    %cst_14 = arith.constant 0.707106769 : f32
    %34 = vector.broadcast %cst_14 : f32 to vector<4x32xf32>
    %35 = arith.mulf %31, %34 : vector<4x32xf32>
    %36 = math.erf %35 : vector<4x32xf32>
    %cst_15 = arith.constant 1.000000e+00 : f32
    %37 = vector.broadcast %cst_15 : f32 to vector<4x32xf32>
    %38 = arith.addf %37, %36 : vector<4x32xf32>
    %39 = arith.mulf %33, %38 : vector<4x32xf32>
    %40 = arith.truncf %39 : vector<4x32xf32> to vector<4x32xbf16>
    %41 = arith.truncf %2 : vector<32x32xf32> to vector<32x32xbf16>
    %cst_16 = arith.constant dense<0.000000e+00> : vector<4x32xf32>
    %42 = tpu.matmul %40, %41, %cst_16 {dimension_numbers = #tpu.dot_dimension_numbers<[1], [0], [0], [1], [0, 0, 1, 1], [], []>} : vector<4x32xbf16>, vector<32x32xbf16>, vector<4x32xf32> -> vector<4x32xf32>
    %c195 = arith.constant 195 : index
    %c0_17 = arith.constant 0 : index
    %43 = vector.load %arg3[%c195, %c0_17] : memref<212x32xf32, #tpu.memory_space<vmem>>, vector<1x32xf32>
    %44 = vector.broadcast %43 : vector<1x32xf32> to vector<4x32xf32>
    %45 = arith.addf %42, %44 : vector<4x32xf32>
    %cst_18 = arith.constant 5.000000e-01 : f32
    %46 = vector.broadcast %cst_18 : f32 to vector<4x32xf32>
    %47 = arith.mulf %46, %45 : vector<4x32xf32>
    %cst_19 = arith.constant 0.707106769 : f32
    %48 = vector.broadcast %cst_19 : f32 to vector<4x32xf32>
    %49 = arith.mulf %45, %48 : vector<4x32xf32>
    %50 = math.erf %49 : vector<4x32xf32>
    %cst_20 = arith.constant 1.000000e+00 : f32
    %51 = vector.broadcast %cst_20 : f32 to vector<4x32xf32>
    %52 = arith.addf %51, %50 : vector<4x32xf32>
    %53 = arith.mulf %47, %52 : vector<4x32xf32>
    %54 = arith.truncf %53 : vector<4x32xf32> to vector<4x32xbf16>
    %55 = arith.truncf %3 : vector<32x32xf32> to vector<32x32xbf16>
    %cst_21 = arith.constant dense<0.000000e+00> : vector<4x32xf32>
    %56 = tpu.matmul %54, %55, %cst_21 {dimension_numbers = #tpu.dot_dimension_numbers<[1], [0], [0], [1], [0, 0, 1, 1], [], []>} : vector<4x32xbf16>, vector<32x32xbf16>, vector<4x32xf32> -> vector<4x32xf32>
    %c196 = arith.constant 196 : index
    %c0_22 = arith.constant 0 : index
    %57 = vector.load %arg3[%c196, %c0_22] : memref<212x32xf32, #tpu.memory_space<vmem>>, vector<1x32xf32>
    %58 = vector.broadcast %57 : vector<1x32xf32> to vector<4x32xf32>
    %59 = arith.addf %56, %58 : vector<4x32xf32>
    %c197 = arith.constant 197 : index
    %c0_23 = arith.constant 0 : index
    %60 = vector.load %arg3[%c197, %c0_23] : memref<212x32xf32, #tpu.memory_space<vmem>>, vector<1x32xf32>
    %c198 = arith.constant 198 : index
    %c0_24 = arith.constant 0 : index
    %61 = vector.load %arg3[%c198, %c0_24] : memref<212x32xf32, #tpu.memory_space<vmem>>, vector<1x32xf32>
    %cst_25 = arith.constant dense<0.000000e+00> : vector<4xf32>
    %62 = vector.multi_reduction <add>, %59, %cst_25 [1] : vector<4x32xf32> to vector<4xf32>
    %63 = vector.shape_cast %62 : vector<4xf32> to vector<4x1xf32>
    %cst_26 = arith.constant 3.200000e+01 : f32
    %64 = vector.broadcast %cst_26 : f32 to vector<4x1xf32>
    %65 = arith.divf %63, %64 : vector<4x1xf32>
    %66 = vector.broadcast %65 : vector<4x1xf32> to vector<4x32xf32>
    %67 = arith.subf %59, %66 : vector<4x32xf32>
    %68 = arith.mulf %67, %67 : vector<4x32xf32>
    %cst_27 = arith.constant dense<0.000000e+00> : vector<4xf32>
    %69 = vector.multi_reduction <add>, %68, %cst_27 [1] : vector<4x32xf32> to vector<4xf32>
    %70 = vector.shape_cast %69 : vector<4xf32> to vector<4x1xf32>
    %cst_28 = arith.constant 3.200000e+01 : f32
    %71 = vector.broadcast %cst_28 : f32 to vector<4x1xf32>
    %72 = arith.divf %70, %71 : vector<4x1xf32>
    %cst_29 = arith.constant 9.99999974E-6 : f32
    %73 = vector.broadcast %cst_29 : f32 to vector<4x1xf32>
    %74 = arith.addf %72, %73 : vector<4x1xf32>
    %75 = math.rsqrt %74 : vector<4x1xf32>
    %76 = vector.broadcast %75 : vector<4x1xf32> to vector<4x32xf32>
    %77 = arith.mulf %67, %76 : vector<4x32xf32>
    %78 = vector.broadcast %60 : vector<1x32xf32> to vector<4x32xf32>
    %79 = arith.mulf %77, %78 : vector<4x32xf32>
    %80 = vector.broadcast %61 : vector<1x32xf32> to vector<4x32xf32>
    %81 = arith.addf %79, %80 : vector<4x32xf32>
    %c0_30 = arith.constant 0 : index
    %c0_31 = arith.constant 0 : index
    %82 = vector.load %arg1[%c0_30, %c0_31] : memref<8x32xf32, #tpu.memory_space<vmem>>, vector<8x32xf32>
    %c96 = arith.constant 96 : index
    %c0_32 = arith.constant 0 : index
    %83 = vector.load %arg3[%c96, %c0_32] : memref<212x32xf32, #tpu.memory_space<vmem>>, vector<32x32xf32>
    %c128 = arith.constant 128 : index
    %c0_33 = arith.constant 0 : index
    %84 = vector.load %arg3[%c128, %c0_33] : memref<212x32xf32, #tpu.memory_space<vmem>>, vector<32x32xf32>
    %c160 = arith.constant 160 : index
    %c0_34 = arith.constant 0 : index
    %85 = vector.load %arg3[%c160, %c0_34] : memref<212x32xf32, #tpu.memory_space<vmem>>, vector<32x32xf32>
    %c199 = arith.constant 199 : index
    %c0_35 = arith.constant 0 : index
    %86 = vector.load %arg3[%c199, %c0_35] : memref<212x32xf32, #tpu.memory_space<vmem>>, vector<1x32xf32>
    %c200 = arith.constant 200 : index
    %c0_36 = arith.constant 0 : index
    %87 = vector.load %arg3[%c200, %c0_36] : memref<212x32xf32, #tpu.memory_space<vmem>>, vector<1x32xf32>
    %cst_37 = arith.constant dense<0.000000e+00> : vector<8xf32>
    %88 = vector.multi_reduction <add>, %82, %cst_37 [1] : vector<8x32xf32> to vector<8xf32>
    %89 = vector.shape_cast %88 : vector<8xf32> to vector<8x1xf32>
    %cst_38 = arith.constant 3.200000e+01 : f32
    %90 = vector.broadcast %cst_38 : f32 to vector<8x1xf32>
    %91 = arith.divf %89, %90 : vector<8x1xf32>
    %92 = vector.broadcast %91 : vector<8x1xf32> to vector<8x32xf32>
    %93 = arith.subf %82, %92 : vector<8x32xf32>
    %94 = arith.mulf %93, %93 : vector<8x32xf32>
    %cst_39 = arith.constant dense<0.000000e+00> : vector<8xf32>
    %95 = vector.multi_reduction <add>, %94, %cst_39 [1] : vector<8x32xf32> to vector<8xf32>
    %96 = vector.shape_cast %95 : vector<8xf32> to vector<8x1xf32>
    %cst_40 = arith.constant 3.200000e+01 : f32
    %97 = vector.broadcast %cst_40 : f32 to vector<8x1xf32>
    %98 = arith.divf %96, %97 : vector<8x1xf32>
    %cst_41 = arith.constant 9.99999974E-6 : f32
    %99 = vector.broadcast %cst_41 : f32 to vector<8x1xf32>
    %100 = arith.addf %98, %99 : vector<8x1xf32>
    %101 = math.rsqrt %100 : vector<8x1xf32>
    %102 = vector.broadcast %101 : vector<8x1xf32> to vector<8x32xf32>
    %103 = arith.mulf %93, %102 : vector<8x32xf32>
    %104 = vector.broadcast %86 : vector<1x32xf32> to vector<8x32xf32>
    %105 = arith.mulf %103, %104 : vector<8x32xf32>
    %106 = vector.broadcast %87 : vector<1x32xf32> to vector<8x32xf32>
    %107 = arith.addf %105, %106 : vector<8x32xf32>
    %108 = arith.truncf %107 : vector<8x32xf32> to vector<8x32xbf16>
    %109 = arith.truncf %83 : vector<32x32xf32> to vector<32x32xbf16>
    %cst_42 = arith.constant dense<0.000000e+00> : vector<8x32xf32>
    %110 = tpu.matmul %108, %109, %cst_42 {dimension_numbers = #tpu.dot_dimension_numbers<[1], [0], [0], [1], [0, 0, 1, 1], [], []>} : vector<8x32xbf16>, vector<32x32xbf16>, vector<8x32xf32> -> vector<8x32xf32>
    %c201 = arith.constant 201 : index
    %c0_43 = arith.constant 0 : index
    %111 = vector.load %arg3[%c201, %c0_43] : memref<212x32xf32, #tpu.memory_space<vmem>>, vector<1x32xf32>
    %112 = vector.broadcast %111 : vector<1x32xf32> to vector<8x32xf32>
    %113 = arith.addf %110, %112 : vector<8x32xf32>
    %cst_44 = arith.constant 5.000000e-01 : f32
    %114 = vector.broadcast %cst_44 : f32 to vector<8x32xf32>
    %115 = arith.mulf %114, %113 : vector<8x32xf32>
    %cst_45 = arith.constant 0.707106769 : f32
    %116 = vector.broadcast %cst_45 : f32 to vector<8x32xf32>
    %117 = arith.mulf %113, %116 : vector<8x32xf32>
    %118 = math.erf %117 : vector<8x32xf32>
    %cst_46 = arith.constant 1.000000e+00 : f32
    %119 = vector.broadcast %cst_46 : f32 to vector<8x32xf32>
    %120 = arith.addf %119, %118 : vector<8x32xf32>
    %121 = arith.mulf %115, %120 : vector<8x32xf32>
    %122 = arith.truncf %121 : vector<8x32xf32> to vector<8x32xbf16>
    %123 = arith.truncf %84 : vector<32x32xf32> to vector<32x32xbf16>
    %cst_47 = arith.constant dense<0.000000e+00> : vector<8x32xf32>
    %124 = tpu.matmul %122, %123, %cst_47 {dimension_numbers = #tpu.dot_dimension_numbers<[1], [0], [0], [1], [0, 0, 1, 1], [], []>} : vector<8x32xbf16>, vector<32x32xbf16>, vector<8x32xf32> -> vector<8x32xf32>
    %c202 = arith.constant 202 : index
    %c0_48 = arith.constant 0 : index
    %125 = vector.load %arg3[%c202, %c0_48] : memref<212x32xf32, #tpu.memory_space<vmem>>, vector<1x32xf32>
    %126 = vector.broadcast %125 : vector<1x32xf32> to vector<8x32xf32>
    %127 = arith.addf %124, %126 : vector<8x32xf32>
    %cst_49 = arith.constant 5.000000e-01 : f32
    %128 = vector.broadcast %cst_49 : f32 to vector<8x32xf32>
    %129 = arith.mulf %128, %127 : vector<8x32xf32>
    %cst_50 = arith.constant 0.707106769 : f32
    %130 = vector.broadcast %cst_50 : f32 to vector<8x32xf32>
    %131 = arith.mulf %127, %130 : vector<8x32xf32>
    %132 = math.erf %131 : vector<8x32xf32>
    %cst_51 = arith.constant 1.000000e+00 : f32
    %133 = vector.broadcast %cst_51 : f32 to vector<8x32xf32>
    %134 = arith.addf %133, %132 : vector<8x32xf32>
    %135 = arith.mulf %129, %134 : vector<8x32xf32>
    %136 = arith.truncf %135 : vector<8x32xf32> to vector<8x32xbf16>
    %137 = arith.truncf %85 : vector<32x32xf32> to vector<32x32xbf16>
    %cst_52 = arith.constant dense<0.000000e+00> : vector<8x32xf32>
    %138 = tpu.matmul %136, %137, %cst_52 {dimension_numbers = #tpu.dot_dimension_numbers<[1], [0], [0], [1], [0, 0, 1, 1], [], []>} : vector<8x32xbf16>, vector<32x32xbf16>, vector<8x32xf32> -> vector<8x32xf32>
    %c203 = arith.constant 203 : index
    %c0_53 = arith.constant 0 : index
    %139 = vector.load %arg3[%c203, %c0_53] : memref<212x32xf32, #tpu.memory_space<vmem>>, vector<1x32xf32>
    %140 = vector.broadcast %139 : vector<1x32xf32> to vector<8x32xf32>
    %141 = arith.addf %138, %140 : vector<8x32xf32>
    %c204 = arith.constant 204 : index
    %c0_54 = arith.constant 0 : index
    %142 = vector.load %arg3[%c204, %c0_54] : memref<212x32xf32, #tpu.memory_space<vmem>>, vector<1x32xf32>
    %c205 = arith.constant 205 : index
    %c0_55 = arith.constant 0 : index
    %143 = vector.load %arg3[%c205, %c0_55] : memref<212x32xf32, #tpu.memory_space<vmem>>, vector<1x32xf32>
    %cst_56 = arith.constant dense<0.000000e+00> : vector<8xf32>
    %144 = vector.multi_reduction <add>, %141, %cst_56 [1] : vector<8x32xf32> to vector<8xf32>
    %145 = vector.shape_cast %144 : vector<8xf32> to vector<8x1xf32>
    %cst_57 = arith.constant 3.200000e+01 : f32
    %146 = vector.broadcast %cst_57 : f32 to vector<8x1xf32>
    %147 = arith.divf %145, %146 : vector<8x1xf32>
    %148 = vector.broadcast %147 : vector<8x1xf32> to vector<8x32xf32>
    %149 = arith.subf %141, %148 : vector<8x32xf32>
    %150 = arith.mulf %149, %149 : vector<8x32xf32>
    %cst_58 = arith.constant dense<0.000000e+00> : vector<8xf32>
    %151 = vector.multi_reduction <add>, %150, %cst_58 [1] : vector<8x32xf32> to vector<8xf32>
    %152 = vector.shape_cast %151 : vector<8xf32> to vector<8x1xf32>
    %cst_59 = arith.constant 3.200000e+01 : f32
    %153 = vector.broadcast %cst_59 : f32 to vector<8x1xf32>
    %154 = arith.divf %152, %153 : vector<8x1xf32>
    %cst_60 = arith.constant 9.99999974E-6 : f32
    %155 = vector.broadcast %cst_60 : f32 to vector<8x1xf32>
    %156 = arith.addf %154, %155 : vector<8x1xf32>
    %157 = math.rsqrt %156 : vector<8x1xf32>
    %158 = vector.broadcast %157 : vector<8x1xf32> to vector<8x32xf32>
    %159 = arith.mulf %149, %158 : vector<8x32xf32>
    %160 = vector.broadcast %142 : vector<1x32xf32> to vector<8x32xf32>
    %161 = arith.mulf %159, %160 : vector<8x32xf32>
    %162 = vector.broadcast %143 : vector<1x32xf32> to vector<8x32xf32>
    %163 = arith.addf %161, %162 : vector<8x32xf32>
    %cst_61 = arith.constant dense<0.000000e+00> : vector<4x8xf32>
    %164 = tpu.matmul %81, %163, %cst_61 {dimension_numbers = #tpu.dot_dimension_numbers<[1], [1], [0], [0], [0, 0, 1, 0], [], []>} : vector<4x32xf32>, vector<8x32xf32>, vector<4x8xf32> -> vector<4x8xf32>
    %cst_62 = arith.constant dense<0xFF800000> : vector<4xf32>
    %165 = vector.multi_reduction <maximumf>, %164, %cst_62 [1] : vector<4x8xf32> to vector<4xf32>
    %166 = vector.shape_cast %165 : vector<4xf32> to vector<4x1xf32>
    %167 = vector.broadcast %166 : vector<4x1xf32> to vector<4x8xf32>
    %168 = arith.subf %164, %167 : vector<4x8xf32>
    %169 = math.exp %168 : vector<4x8xf32>
    %cst_63 = arith.constant dense<0.000000e+00> : vector<4xf32>
    %170 = vector.multi_reduction <add>, %169, %cst_63 [1] : vector<4x8xf32> to vector<4xf32>
    %171 = vector.shape_cast %170 : vector<4xf32> to vector<4x1xf32>
    %172 = vector.broadcast %171 : vector<4x1xf32> to vector<4x8xf32>
    %173 = arith.divf %169, %172 : vector<4x8xf32>
    %c0_64 = arith.constant 0 : index
    %c0_65 = arith.constant 0 : index
    %174 = vector.load %arg2[%c0_64, %c0_65] : memref<4x8xf32, #tpu.memory_space<vmem>>, vector<4x8xf32>
    %175 = arith.mulf %173, %174 : vector<4x8xf32>
    %cst_66 = arith.constant dense<0.000000e+00> : vector<4xf32>
    %176 = vector.multi_reduction <add>, %175, %cst_66 [1] : vector<4x8xf32> to vector<4xf32>
    %177 = vector.shape_cast %176 : vector<4xf32> to vector<4x1xf32>
    %cst_67 = arith.constant dense<0.000000e+00> : vector<4xf32>
    %178 = vector.multi_reduction <add>, %174, %cst_67 [1] : vector<4x8xf32> to vector<4xf32>
    %179 = vector.shape_cast %178 : vector<4xf32> to vector<4x1xf32>
    %cst_68 = arith.constant 8.000000e+00 : f32
    %180 = vector.broadcast %cst_68 : f32 to vector<4x1xf32>
    %181 = arith.divf %179, %180 : vector<4x1xf32>
    %182 = vector.broadcast %181 : vector<4x1xf32> to vector<4x8xf32>
    %183 = arith.subf %174, %182 : vector<4x8xf32>
    %184 = arith.mulf %183, %183 : vector<4x8xf32>
    %cst_69 = arith.constant dense<0.000000e+00> : vector<4xf32>
    %185 = vector.multi_reduction <add>, %184, %cst_69 [1] : vector<4x8xf32> to vector<4xf32>
    %186 = vector.shape_cast %185 : vector<4xf32> to vector<4x1xf32>
    %cst_70 = arith.constant 7.000000e+00 : f32
    %187 = vector.broadcast %cst_70 : f32 to vector<4x1xf32>
    %188 = arith.divf %186, %187 : vector<4x1xf32>
    %189 = math.sqrt %188 : vector<4x1xf32>
    %c206 = arith.constant 206 : index
    %c0_71 = arith.constant 0 : index
    %190 = vector.load %arg3[%c206, %c0_71] : memref<212x32xf32, #tpu.memory_space<vmem>>, vector<1x10xf32>
    %c207 = arith.constant 207 : index
    %c0_72 = arith.constant 0 : index
    %191 = vector.load %arg3[%c207, %c0_72] : memref<212x32xf32, #tpu.memory_space<vmem>>, vector<1x10xf32>
    %c208 = arith.constant 208 : index
    %c0_73 = arith.constant 0 : index
    %192 = vector.load %arg3[%c208, %c0_73] : memref<212x32xf32, #tpu.memory_space<vmem>>, vector<1x10xf32>
    %c209 = arith.constant 209 : index
    %c0_74 = arith.constant 0 : index
    %193 = vector.load %arg3[%c209, %c0_74] : memref<212x32xf32, #tpu.memory_space<vmem>>, vector<1x10xf32>
    %c210 = arith.constant 210 : index
    %c0_75 = arith.constant 0 : index
    %194 = vector.load %arg3[%c210, %c0_75] : memref<212x32xf32, #tpu.memory_space<vmem>>, vector<1x10xf32>
    %c211 = arith.constant 211 : index
    %c0_76 = arith.constant 0 : index
    %195 = vector.load %arg3[%c211, %c0_76] : memref<212x32xf32, #tpu.memory_space<vmem>>, vector<1x10xf32>
    %196 = vector.broadcast %181 : vector<4x1xf32> to vector<4x10xf32>
    %197 = vector.broadcast %190 : vector<1x10xf32> to vector<4x10xf32>
    %198 = arith.mulf %196, %197 : vector<4x10xf32>
    %199 = vector.broadcast %189 : vector<4x1xf32> to vector<4x10xf32>
    %200 = vector.broadcast %191 : vector<1x10xf32> to vector<4x10xf32>
    %201 = arith.mulf %199, %200 : vector<4x10xf32>
    %202 = arith.addf %198, %201 : vector<4x10xf32>
    %203 = vector.broadcast %192 : vector<1x10xf32> to vector<4x10xf32>
    %204 = arith.addf %202, %203 : vector<4x10xf32>
    %cst_77 = arith.constant 0.000000e+00 : f32
    %205 = vector.broadcast %cst_77 : f32 to vector<4x10xf32>
    %206 = arith.maximumf %204, %205 : vector<4x10xf32>
    %207 = vector.broadcast %193 : vector<1x10xf32> to vector<4x10xf32>
    %208 = arith.mulf %206, %207 : vector<4x10xf32>
    %cst_78 = arith.constant dense<0.000000e+00> : vector<4xf32>
    %209 = vector.multi_reduction <add>, %208, %cst_78 [1] : vector<4x10xf32> to vector<4xf32>
    %210 = vector.shape_cast %209 : vector<4xf32> to vector<4x1xf32>
    %211 = vector.extract_strided_slice %195 {offsets = [0, 0], sizes = [1, 1], strides = [1, 1]} : vector<1x10xf32> to vector<1x1xf32>
    %212 = vector.broadcast %211 : vector<1x1xf32> to vector<4x1xf32>
    %213 = arith.addf %210, %212 : vector<4x1xf32>
    %214 = vector.broadcast %194 : vector<1x10xf32> to vector<4x10xf32>
    %215 = arith.mulf %206, %214 : vector<4x10xf32>
    %cst_79 = arith.constant dense<0.000000e+00> : vector<4xf32>
    %216 = vector.multi_reduction <add>, %215, %cst_79 [1] : vector<4x10xf32> to vector<4xf32>
    %217 = vector.shape_cast %216 : vector<4xf32> to vector<4x1xf32>
    %218 = vector.extract_strided_slice %195 {offsets = [0, 1], sizes = [1, 1], strides = [1, 1]} : vector<1x10xf32> to vector<1x1xf32>
    %219 = vector.broadcast %218 : vector<1x1xf32> to vector<4x1xf32>
    %220 = arith.addf %217, %219 : vector<4x1xf32>
    %cst_80 = arith.constant 0.000000e+00 : f32
    %221 = vector.broadcast %cst_80 : f32 to vector<4x1xf32>
    %222 = arith.maximumf %213, %221 : vector<4x1xf32>
    %223 = math.absf %213 : vector<4x1xf32>
    %cst_81 = arith.constant 0.000000e+00 : f32
    %224 = vector.broadcast %cst_81 : f32 to vector<4x1xf32>
    %225 = arith.subf %224, %223 : vector<4x1xf32>
    %226 = math.exp %225 : vector<4x1xf32>
    %227 = math.log1p %226 : vector<4x1xf32>
    %228 = arith.addf %222, %227 : vector<4x1xf32>
    %cst_82 = arith.constant 0.00999999977 : f32
    %cst_83 = arith.constant 1.000000e+01 : f32
    %229 = vector.broadcast %cst_82 : f32 to vector<4x1xf32>
    %230 = arith.maximumf %229, %228 : vector<4x1xf32>
    %231 = vector.broadcast %cst_83 : f32 to vector<4x1xf32>
    %232 = arith.minimumf %231, %230 : vector<4x1xf32>
    %233 = math.tanh %220 : vector<4x1xf32>
    %cst_84 = arith.constant 9.99999974E-5 : f32
    %cst_85 = arith.constant 0.999899983 : f32
    %234 = vector.broadcast %cst_84 : f32 to vector<4x1xf32>
    %235 = arith.maximumf %234, %177 : vector<4x1xf32>
    %236 = vector.broadcast %cst_85 : f32 to vector<4x1xf32>
    %237 = arith.minimumf %236, %235 : vector<4x1xf32>
    %238 = math.log %237 : vector<4x1xf32>
    %cst_86 = arith.constant 0.000000e+00 : f32
    %239 = vector.broadcast %cst_86 : f32 to vector<4x1xf32>
    %240 = arith.subf %239, %237 : vector<4x1xf32>
    %241 = math.log1p %240 : vector<4x1xf32>
    %242 = arith.subf %238, %241 : vector<4x1xf32>
    %243 = arith.divf %242, %232 : vector<4x1xf32>
    %244 = arith.addf %243, %233 : vector<4x1xf32>
    %cst_87 = arith.constant 0.000000e+00 : f32
    %245 = vector.broadcast %cst_87 : f32 to vector<4x1xf32>
    %246 = arith.subf %245, %244 : vector<4x1xf32>
    %247 = math.exp %246 : vector<4x1xf32>
    %cst_88 = arith.constant 1.000000e+00 : f32
    %248 = vector.broadcast %cst_88 : f32 to vector<4x1xf32>
    %249 = arith.addf %248, %247 : vector<4x1xf32>
    %cst_89 = arith.constant 1.000000e+00 : f32
    %250 = vector.broadcast %cst_89 : f32 to vector<4x1xf32>
    %251 = arith.divf %250, %249 : vector<4x1xf32>
    %c0_90 = arith.constant 0 : index
    %c0_91 = arith.constant 0 : index
    %252 = vector.load %arg4[%c0_90, %c0_91] : memref<4x1xf32, #tpu.memory_space<vmem>>, vector<4x1xf32>
    tpu.vector_store %arg4[%c0_90, %c0_91], %251 {strides = array<i32>} : memref<4x1xf32, #tpu.memory_space<vmem>>, vector<4x1xf32>,
    return
  }
}

</mosaic_0001>

<llo_original>
// kernel: tpu_custom_call.1
$region0: #{tpu_custom_call.1}
  #allocation0 [shape = 'u32[]', space=smem, size = 0x4, offset = 0x4, fixed_abs, tag = 'smem constant byte address 0x4 - core index']
  #allocation1 [shape = 'u32[144,128]{1,0:T(1,128)}', space=vmem, size = 0x12000, scoped, tag = 'internal scratch']
  %s0 = inlined_call_operand.vmem [shape: f32[4,32], index: 0, kind: input, shape index: {}]
  %s1 = inlined_call_operand.vmem [shape: f32[8,32], index: 1, kind: input, shape index: {}]
  %s2 = inlined_call_operand.vmem [shape: f32[4,8], index: 2, kind: input, shape index: {}]
  %s3 = inlined_call_operand.vmem [shape: f32[212,32], index: 3, kind: input, shape index: {}]
  %s4 = inlined_call_operand.vmem [shape: f32[4,1], index: 4, kind: output, shape index: {}]
  %s5 = sld [smem:[#allocation0]]
  $region26: #{tpu_custom_call.1} parent=0
    _
  %s7 = ssub.s32 1, %s5
  %s8 = scalar_select 0, %s7, %s5
  // Predicated region
  $region2: #{tpu_custom_call.1} parent=0 // pred_check
    _
  $region3: #{tpu_custom_call.1} parent=0 // pred_check_branch
    %10 = sbr.rel (0) target = $region5
  $region4: #{tpu_custom_call.1} parent=0 // pred_region
    _
  $region5: #{tpu_custom_call.1} parent=0 // pred_fallthru
    _
  // Predicated region
  $region6: #{tpu_custom_call.1} parent=0 // pred_check
    _
  $region7: #{tpu_custom_call.1} parent=0 // pred_check_branch
    %12 = sbr.rel (0) target = $region9
  $region8: #{tpu_custom_call.1} parent=0 // pred_region
    _
  $region9: #{tpu_custom_call.1} parent=0 // pred_fallthru
    _
  // Predicated region
  $region10: #{tpu_custom_call.1} parent=0 // pred_check
    _
  $region11: #{tpu_custom_call.1} parent=0 // pred_check_branch
    %14 = sbr.rel (0) target = $region13
  $region12: #{tpu_custom_call.1} parent=0 // pred_region
    _
  $region13: #{tpu_custom_call.1} parent=0 // pred_fallthru
    _
  // Predicated region
  $region14: #{tpu_custom_call.1} parent=0 // pred_check
    _
  $region15: #{tpu_custom_call.1} parent=0 // pred_check_branch
    %16 = sbr.rel (0) target = $region17
  $region16: #{tpu_custom_call.1} parent=0 // pred_region
    _
  $region17: #{tpu_custom_call.1} parent=0 // pred_fallthru
    _
  %v18 = vld [vmem:[%s0] sm:$0xf]
  %v19 = vld [vmem:[%s3] sm:$0xff]
  %v20 = vld [vmem:[%s3 + $0x8] sm:$0xff]
  %v21 = vld [vmem:[%s3 + $0x10] sm:$0xff]
  %v22 = vld [vmem:[%s3 + $0x18] sm:$0xff]
  %v23 = vld [vmem:[%s3 + $0x20] sm:$0xff]
  %v24 = vld [vmem:[%s3 + $0x28] sm:$0xff]
  %v25 = vld [vmem:[%s3 + $0x30] sm:$0xff]
  %v26 = vld [vmem:[%s3 + $0x38] sm:$0xff]
  %v27 = vld [vmem:[%s3 + $0x40] sm:$0xff]
  %v28 = vld [vmem:[%s3 + $0x48] sm:$0xff]
  %v29 = vld [vmem:[%s3 + $0x50] sm:$0xff]
  %v30 = vld [vmem:[%s3 + $0x58] sm:$0xff]
  %v31 = vld [vmem:[%s3 + $0xc0] sm:$0x1]
  %v32 = vld [vmem:[%s3 + $0xc1] sm:$0x1]
  %vm33 = vcmask 257024
  %v34 = vsel %vm33, %v18, 0.0
  %35 = vadd.xlane.f32.xlu0 %v34
  %v36 = vpop.xlane.xlu0 %35
  %v37 = vrcp.pop 32.0
  %v38 = vmul.f32 %v36, %v37
  %v39 = vsub.f32 %v18, %v38
  %v40 = vmul.f32 %v39, %v39
  %v41 = vsel %vm33, %v40, 0.0
  %42 = vadd.xlane.f32.xlu0 %v41
  %v43 = vpop.xlane.xlu0 %42
  %v44 = vmul.f32 %v43, %v37
  %v45 = vadd.f32 %v44, 1e-05
  %v46 = vrsqrt.pop %v45
  %v47 = vmul.f32 %v39, %v46
  %v48 = vlaneseq
  %v49 = vshrl.u32 %v48, 7
  %v50 = vsub.s32 0, %v49
  %v51 = vrot.slane %v31, %v50
  %v52 = vmul.f32 %v47, %v51
  %v53 = vlaneseq
  %v54 = vshrl.u32 %v53, 7
  %v55 = vsub.s32 0, %v54
  %v56 = vrot.slane %v32, %v55
  %v57 = vadd.f32 %v52, %v56
  %v58 = vpack.c.bf16 %v57, %v57
  %v59 = vpack.c.bf16 %v20, %v19
  %v60 = vpack.c.bf16 %v22, %v21
  %v61 = vld [vmem:[%s3 + $0xc2] sm:$0x1]
  %v62 = vlaneseq
  %v63 = vshrl.u32 %v62, 7
  %v64 = vsub.s32 0, %v63
  %v65 = vrot.slane %v61, %v64
  %vm66 = vcmask 261120
  %v68 = vsel %vm66, %v58, 0
  %70 = vmatprep.subr.bf16.mxu0 0
  %71 = vmatpush1.bf16.msra.mxu0 %v59
  %72 = vmatprep.subr.bf16.mxu0 0
  %73 = vmatpush1.bf16.msra.mxu0 %v60
  %74 = vmatprep.subr.bf16.mxu0 0
  %75 = vmatpush1.bf16.msra.mxu0 0
  %76 = vmatprep.subr.bf16.mxu0 0
  %77 = vmatpush1.bf16.msra.mxu0 0
  %78 = vmatprep.subr.bf16.mxu0 0
  %79 = vmatpush1.bf16.msra.mxu0 0
  %80 = vmatprep.subr.bf16.mxu0 0
  %81 = vmatpush1.bf16.msra.mxu0 0
  %82 = vmatprep.subr.bf16.mxu0 0
  %83 = vmatpush1.bf16.msra.mxu0 0
  %84 = vmatprep.subr.bf16.mxu0 0
  %85 = vmatpush1.bf16.msra.mxu0 0
  %86 = vmatprep.subr.bf16.mxu0 0
  %87 = vmatpush1.bf16.msra.mxu0 0
  %88 = vmatprep.subr.bf16.mxu0 0
  %89 = vmatpush1.bf16.msra.mxu0 0
  %90 = vmatprep.subr.bf16.mxu0 0
  %91 = vmatpush1.bf16.msra.mxu0 0
  %92 = vmatprep.subr.bf16.mxu0 0
  %93 = vmatpush1.bf16.msra.mxu0 0
  %94 = vmatprep.subr.bf16.mxu0 0
  %95 = vmatpush1.bf16.msra.mxu0 0
  %96 = vmatprep.subr.bf16.mxu0 0
  %97 = vmatpush1.bf16.msra.mxu0 0
  %98 = vmatprep.subr.bf16.mxu0 0
  %99 = vmatpush1.bf16.msra.mxu0 0
  %100 = vmatprep.subr.bf16.mxu0 0
  %101 = vmatpush1.bf16.msra.mxu0 0
  %102 = vmatprep.mubr.bf16.mxu0 0
  %103 = vmatmul.mubr.bf16.gmra.mrb[0].mxu0 %v68
  %v104 = vpop.f32.mrb[0].mxu0
  %v105 = vadd.f32 %v65, %v104
  %v106 = vpop.f32.mrb[0].mxu0
  %v107 = vpop.f32.mrb[0].mxu0
  %v108 = vpop.f32.mrb[0].mxu0
  %109 = vdwg.mxu0
  %v110 = vmul.f32 %v105, 0.5
  %v111 = vmul.f32 %v105, 0.70710677
  %v112 = verf.f32.pop %v111
  %v113 = vadd.f32 %v112, 1.0
  %v114 = vmul.f32 %v110, %v113
  %v115 = vpack.c.bf16 %v114, %v114
  %v116 = vpack.c.bf16 %v24, %v23
  %v117 = vpack.c.bf16 %v26, %v25
  %v118 = vld [vmem:[%s3 + $0xc3] sm:$0x1]
  %v119 = vlaneseq
  %v120 = vshrl.u32 %v119, 7
  %v121 = vsub.s32 0, %v120
  %v122 = vrot.slane %v118, %v121
  %v124 = vsel %vm66, %v115, 0
  %126 = vmatprep.subr.bf16.mxu0 0
  %127 = vmatpush1.bf16.msra.mxu0 %v116
  %128 = vmatprep.subr.bf16.mxu0 0
  %129 = vmatpush1.bf16.msra.mxu0 %v117
  %130 = vmatprep.subr.bf16.mxu0 0
  %131 = vmatpush1.bf16.msra.mxu0 0
  %132 = vmatprep.subr.bf16.mxu0 0
  %133 = vmatpush1.bf16.msra.mxu0 0
  %134 = vmatprep.subr.bf16.mxu0 0
  %135 = vmatpush1.bf16.msra.mxu0 0
  %136 = vmatprep.subr.bf16.mxu0 0
  %137 = vmatpush1.bf16.msra.mxu0 0
  %138 = vmatprep.subr.bf16.mxu0 0
  %139 = vmatpush1.bf16.msra.mxu0 0
  %140 = vmatprep.subr.bf16.mxu0 0
  %141 = vmatpush1.bf16.msra.mxu0 0
  %142 = vmatprep.subr.bf16.mxu0 0
  %143 = vmatpush1.bf16.msra.mxu0 0
  %144 = vmatprep.subr.bf16.mxu0 0
  %145 = vmatpush1.bf16.msra.mxu0 0
  %146 = vmatprep.subr.bf16.mxu0 0
  %147 = vmatpush1.bf16.msra.mxu0 0
  %148 = vmatprep.subr.bf16.mxu0 0
  %149 = vmatpush1.bf16.msra.mxu0 0
  %150 = vmatprep.subr.bf16.mxu0 0
  %151 = vmatpush1.bf16.msra.mxu0 0
  %152 = vmatprep.subr.bf16.mxu0 0
  %153 = vmatpush1.bf16.msra.mxu0 0
  %154 = vmatprep.subr.bf16.mxu0 0
  %155 = vmatpush1.bf16.msra.mxu0 0
  %156 = vmatprep.subr.bf16.mxu0 0
  %157 = vmatpush1.bf16.msra.mxu0 0
  %158 = vmatprep.mubr.bf16.mxu0 0
  %159 = vmatmul.mubr.bf16.gmra.mrb[0].mxu0 %v124
  %v160 = vpop.f32.mrb[0].mxu0
  %v161 = vadd.f32 %v122, %v160
  %v162 = vpop.f32.mrb[0].mxu0
  %v163 = vpop.f32.mrb[0].mxu0
  %v164 = vpop.f32.mrb[0].mxu0
  %165 = vdwg.mxu0
  %v166 = vmul.f32 %v161, 0.5
  %v167 = vmul.f32 %v161, 0.70710677
  %v168 = verf.f32.pop %v167
  %v169 = vadd.f32 %v168, 1.0
  %v170 = vmul.f32 %v166, %v169
  %v171 = vpack.c.bf16 %v170, %v170
  %v172 = vpack.c.bf16 %v28, %v27
  %v173 = vpack.c.bf16 %v30, %v29
  %v174 = vld [vmem:[%s3 + $0xc4] sm:$0x1]
  %v175 = vlaneseq
  %v176 = vshrl.u32 %v175, 7
  %v177 = vsub.s32 0, %v176
  %v178 = vrot.slane %v174, %v177
  %v180 = vsel %vm66, %v171, 0
  %182 = vmatprep.subr.bf16.mxu0 0
  %183 = vmatpush1.bf16.msra.mxu0 %v172
  %184 = vmatprep.subr.bf16.mxu0 0
  %185 = vmatpush1.bf16.msra.mxu0 %v173
  %186 = vmatprep.subr.bf16.mxu0 0
  %187 = vmatpush1.bf16.msra.mxu0 0
  %188 = vmatprep.subr.bf16.mxu0 0
  %189 = vmatpush1.bf16.msra.mxu0 0
  %190 = vmatprep.subr.bf16.mxu0 0
  %191 = vmatpush1.bf16.msra.mxu0 0
  %192 = vmatprep.subr.bf16.mxu0 0
  %193 = vmatpush1.bf16.msra.mxu0 0
  %194 = vmatprep.subr.bf16.mxu0 0
  %195 = vmatpush1.bf16.msra.mxu0 0
  %196 = vmatprep.subr.bf16.mxu0 0
  %197 = vmatpush1.bf16.msra.mxu0 0
  %198 = vmatprep.subr.bf16.mxu0 0
  %199 = vmatpush1.bf16.msra.mxu0 0
  %200 = vmatprep.subr.bf16.mxu0 0
  %201 = vmatpush1.bf16.msra.mxu0 0
  %202 = vmatprep.subr.bf16.mxu0 0
  %203 = vmatpush1.bf16.msra.mxu0 0
  %204 = vmatprep.subr.bf16.mxu0 0
  %205 = vmatpush1.bf16.msra.mxu0 0
  %206 = vmatprep.subr.bf16.mxu0 0
  %207 = vmatpush1.bf16.msra.mxu0 0
  %208 = vmatprep.subr.bf16.mxu0 0
  %209 = vmatpush1.bf16.msra.mxu0 0
  %210 = vmatprep.subr.bf16.mxu0 0
  %211 = vmatpush1.bf16.msra.mxu0 0
  %212 = vmatprep.subr.bf16.mxu0 0
  %213 = vmatpush1.bf16.msra.mxu0 0
  %214 = vmatprep.mubr.bf16.mxu0 0
  %215 = vmatmul.mubr.bf16.gmra.mrb[0].mxu0 %v180
  %v216 = vpop.f32.mrb[0].mxu0
  %v217 = vadd.f32 %v178, %v216
  %v218 = vpop.f32.mrb[0].mxu0
  %v219 = vpop.f32.mrb[0].mxu0
  %v220 = vpop.f32.mrb[0].mxu0
  %221 = vdwg.mxu0
  %v222 = vld [vmem:[%s3 + $0xc5] sm:$0x1]
  %v223 = vld [vmem:[%s3 + $0xc6] sm:$0x1]
  %v224 = vsel %vm33, %v217, 0.0
  %225 = vadd.xlane.f32.xlu0 %v224
  %v226 = vpop.xlane.xlu0 %225
  %v227 = vmul.f32 %v226, %v37
  %v228 = vsub.f32 %v217, %v227
  %v229 = vmul.f32 %v228, %v228
  %v230 = vsel %vm33, %v229, 0.0
  %231 = vadd.xlane.f32.xlu0 %v230
  %v232 = vpop.xlane.xlu0 %231
  %v233 = vmul.f32 %v232, %v37
  %v234 = vadd.f32 %v233, 1e-05
  %v235 = vrsqrt.pop %v234
  %v236 = vmul.f32 %v228, %v235
  %v237 = vlaneseq
  %v238 = vshrl.u32 %v237, 7
  %v239 = vsub.s32 0, %v238
  %v240 = vrot.slane %v222, %v239
  %v241 = vmul.f32 %v236, %v240
  %v242 = vlaneseq
  %v243 = vshrl.u32 %v242, 7
  %v244 = vsub.s32 0, %v243
  %v245 = vrot.slane %v223, %v244
  %v246 = vadd.f32 %v241, %v245
  %v247 = vld [vmem:[%s1] sm:$0xff]
  %v248 = vld [vmem:[%s3 + $0x60] sm:$0xff]
  %v249 = vld [vmem:[%s3 + $0x68] sm:$0xff]
  %v250 = vld [vmem:[%s3 + $0x70] sm:$0xff]
  %v251 = vld [vmem:[%s3 + $0x78] sm:$0xff]
  %v252 = vld [vmem:[%s3 + $0x80] sm:$0xff]
  %v253 = vld [vmem:[%s3 + $0x88] sm:$0xff]
  %v254 = vld [vmem:[%s3 + $0x90] sm:$0xff]
  %v255 = vld [vmem:[%s3 + $0x98] sm:$0xff]
  %v256 = vld [vmem:[%s3 + $0xa0] sm:$0xff]
  %v257 = vld [vmem:[%s3 + $0xa8] sm:$0xff]
  %v258 = vld [vmem:[%s3 + $0xb0] sm:$0xff]
  %v259 = vld [vmem:[%s3 + $0xb8] sm:$0xff]
  %v260 = vld [vmem:[%s3 + $0xc7] sm:$0x1]
  %v261 = vld [vmem:[%s3 + $0xc8] sm:$0x1]
  %v262 = vsel %vm66, %v247, 0.0
  %263 = vadd.xlane.f32.xlu0 %v262
  %v264 = vpop.xlane.xlu0 %263
  %v265 = vmul.f32 %v264, %v37
  %v266 = vsub.f32 %v247, %v265
  %v267 = vmul.f32 %v266, %v266
  %v268 = vsel %vm66, %v267, 0.0
  %269 = vadd.xlane.f32.xlu0 %v268
  %v270 = vpop.xlane.xlu0 %269
  %v271 = vmul.f32 %v270, %v37
  %v272 = vadd.f32 %v271, 1e-05
  %v273 = vrsqrt.pop %v272
  %v274 = vmul.f32 %v266, %v273
  %v275 = vlaneseq
  %v276 = vshrl.u32 %v275, 7
  %v277 = vsub.s32 0, %v276
  %v278 = vrot.slane %v260, %v277
  %v279 = vmul.f32 %v274, %v278
  %v280 = vlaneseq
  %v281 = vshrl.u32 %v280, 7
  %v282 = vsub.s32 0, %v281
  %v283 = vrot.slane %v261, %v282
  %v284 = vadd.f32 %v279, %v283
  %v285 = vpack.c.bf16 %v284, %v284
  %v286 = vpack.c.bf16 %v249, %v248
  %v287 = vpack.c.bf16 %v251, %v250
  %v288 = vld [vmem:[%s3 + $0xc9] sm:$0x1]
  %v289 = vlaneseq
  %v290 = vshrl.u32 %v289, 7
  %v291 = vsub.s32 0, %v290
  %v292 = vrot.slane %v288, %v291
  %v294 = vsel %vm66, %v285, 0
  %296 = vmatprep.subr.bf16.mxu0 0
  %297 = vmatpush1.bf16.msra.mxu0 %v286
  %298 = vmatprep.subr.bf16.mxu0 0
  %299 = vmatpush1.bf16.msra.mxu0 %v287
  %300 = vmatprep.subr.bf16.mxu0 0
  %301 = vmatpush1.bf16.msra.mxu0 0
  %302 = vmatprep.subr.bf16.mxu0 0
  %303 = vmatpush1.bf16.msra.mxu0 0
  %304 = vmatprep.subr.bf16.mxu0 0
  %305 = vmatpush1.bf16.msra.mxu0 0
  %306 = vmatprep.subr.bf16.mxu0 0
  %307 = vmatpush1.bf16.msra.mxu0 0
  %308 = vmatprep.subr.bf16.mxu0 0
  %309 = vmatpush1.bf16.msra.mxu0 0
  %310 = vmatprep.subr.bf16.mxu0 0
  %311 = vmatpush1.bf16.msra.mxu0 0
  %312 = vmatprep.subr.bf16.mxu0 0
  %313 = vmatpush1.bf16.msra.mxu0 0
  %314 = vmatprep.subr.bf16.mxu0 0
  %315 = vmatpush1.bf16.msra.mxu0 0
  %316 = vmatprep.subr.bf16.mxu0 0
  %317 = vmatpush1.bf16.msra.mxu0 0
  %318 = vmatprep.subr.bf16.mxu0 0
  %319 = vmatpush1.bf16.msra.mxu0 0
  %320 = vmatprep.subr.bf16.mxu0 0
  %321 = vmatpush1.bf16.msra.mxu0 0
  %322 = vmatprep.subr.bf16.mxu0 0
  %323 = vmatpush1.bf16.msra.mxu0 0
  %324 = vmatprep.subr.bf16.mxu0 0
  %325 = vmatpush1.bf16.msra.mxu0 0
  %326 = vmatprep.subr.bf16.mxu0 0
  %327 = vmatpush1.bf16.msra.mxu0 0
  %328 = vmatprep.mubr.bf16.mxu0 0
  %329 = vmatmul.mubr.bf16.gmra.mrb[0].mxu0 %v294
  %v330 = vpop.f32.mrb[0].mxu0
  %v331 = vadd.f32 %v292, %v330
  %v332 = vpop.f32.mrb[0].mxu0
  %v333 = vpop.f32.mrb[0].mxu0
  %v334 = vpop.f32.mrb[0].mxu0
  %335 = vdwg.mxu0
  %v336 = vmul.f32 %v331, 0.5
  %v337 = vmul.f32 %v331, 0.70710677
  %v338 = verf.f32.pop %v337
  %v339 = vadd.f32 %v338, 1.0
  %v340 = vmul.f32 %v336, %v339
  %v341 = vpack.c.bf16 %v340, %v340
  %v342 = vpack.c.bf16 %v253, %v252
  %v343 = vpack.c.bf16 %v255, %v254
  %v344 = vld [vmem:[%s3 + $0xca] sm:$0x1]
  %v345 = vlaneseq
  %v346 = vshrl.u32 %v345, 7
  %v347 = vsub.s32 0, %v346
  %v348 = vrot.slane %v344, %v347
  %v350 = vsel %vm66, %v341, 0
  %352 = vmatprep.subr.bf16.mxu0 0
  %353 = vmatpush1.bf16.msra.mxu0 %v342
  %354 = vmatprep.subr.bf16.mxu0 0
  %355 = vmatpush1.bf16.msra.mxu0 %v343
  %356 = vmatprep.subr.bf16.mxu0 0
  %357 = vmatpush1.bf16.msra.mxu0 0
  %358 = vmatprep.subr.bf16.mxu0 0
  %359 = vmatpush1.bf16.msra.mxu0 0
  %360 = vmatprep.subr.bf16.mxu0 0
  %361 = vmatpush1.bf16.msra.mxu0 0
  %362 = vmatprep.subr.bf16.mxu0 0
  %363 = vmatpush1.bf16.msra.mxu0 0
  %364 = vmatprep.subr.bf16.mxu0 0
  %365 = vmatpush1.bf16.msra.mxu0 0
  %366 = vmatprep.subr.bf16.mxu0 0
  %367 = vmatpush1.bf16.msra.mxu0 0
  %368 = vmatprep.subr.bf16.mxu0 0
  %369 = vmatpush1.bf16.msra.mxu0 0
  %370 = vmatprep.subr.bf16.mxu0 0
  %371 = vmatpush1.bf16.msra.mxu0 0
  %372 = vmatprep.subr.bf16.mxu0 0
  %373 = vmatpush1.bf16.msra.mxu0 0
  %374 = vmatprep.subr.bf16.mxu0 0
  %375 = vmatpush1.bf16.msra.mxu0 0
  %376 = vmatprep.subr.bf16.mxu0 0
  %377 = vmatpush1.bf16.msra.mxu0 0
  %378 = vmatprep.subr.bf16.mxu0 0
  %379 = vmatpush1.bf16.msra.mxu0 0
  %380 = vmatprep.subr.bf16.mxu0 0
  %381 = vmatpush1.bf16.msra.mxu0 0
  %382 = vmatprep.subr.bf16.mxu0 0
  %383 = vmatpush1.bf16.msra.mxu0 0
  %384 = vmatprep.mubr.bf16.mxu0 0
  %385 = vmatmul.mubr.bf16.gmra.mrb[0].mxu0 %v350
  %v386 = vpop.f32.mrb[0].mxu0
  %v387 = vadd.f32 %v348, %v386
  %v388 = vpop.f32.mrb[0].mxu0
  %v389 = vpop.f32.mrb[0].mxu0
  %v390 = vpop.f32.mrb[0].mxu0
  %391 = vdwg.mxu0
  %v392 = vmul.f32 %v387, 0.5
  %v393 = vmul.f32 %v387, 0.70710677
  %v394 = verf.f32.pop %v393
  %v395 = vadd.f32 %v394, 1.0
  %v396 = vmul.f32 %v392, %v395
  %v397 = vpack.c.bf16 %v396, %v396
  %v398 = vpack.c.bf16 %v257, %v256
  %v399 = vpack.c.bf16 %v259, %v258
  %v400 = vld [vmem:[%s3 + $0xcb] sm:$0x1]
  %v401 = vlaneseq
  %v402 = vshrl.u32 %v401, 7
  %v403 = vsub.s32 0, %v402
  %v404 = vrot.slane %v400, %v403
  %v406 = vsel %vm66, %v397, 0
  %408 = vmatprep.subr.bf16.mxu0 0
  %409 = vmatpush1.bf16.msra.mxu0 %v398
  %410 = vmatprep.subr.bf16.mxu0 0
  %411 = vmatpush1.bf16.msra.mxu0 %v399
  %412 = vmatprep.subr.bf16.mxu0 0
  %413 = vmatpush1.bf16.msra.mxu0 0
  %414 = vmatprep.subr.bf16.mxu0 0
  %415 = vmatpush1.bf16.msra.mxu0 0
  %416 = vmatprep.subr.bf16.mxu0 0
  %417 = vmatpush1.bf16.msra.mxu0 0
  %418 = vmatprep.subr.bf16.mxu0 0
  %419 = vmatpush1.bf16.msra.mxu0 0
  %420 = vmatprep.subr.bf16.mxu0 0
  %421 = vmatpush1.bf16.msra.mxu0 0
  %422 = vmatprep.subr.bf16.mxu0 0
  %423 = vmatpush1.bf16.msra.mxu0 0
  %424 = vmatprep.subr.bf16.mxu0 0
  %425 = vmatpush1.bf16.msra.mxu0 0
  %426 = vmatprep.subr.bf16.mxu0 0
  %427 = vmatpush1.bf16.msra.mxu0 0
  %428 = vmatprep.subr.bf16.mxu0 0
  %429 = vmatpush1.bf16.msra.mxu0 0
  %430 = vmatprep.subr.bf16.mxu0 0
  %431 = vmatpush1.bf16.msra.mxu0 0
  %432 = vmatprep.subr.bf16.mxu0 0
  %433 = vmatpush1.bf16.msra.mxu0 0
  %434 = vmatprep.subr.bf16.mxu0 0
  %435 = vmatpush1.bf16.msra.mxu0 0
  %436 = vmatprep.subr.bf16.mxu0 0
  %437 = vmatpush1.bf16.msra.mxu0 0
  %438 = vmatprep.subr.bf16.mxu0 0
  %439 = vmatpush1.bf16.msra.mxu0 0
  %440 = vmatprep.mubr.bf16.mxu0 0
  %441 = vmatmul.mubr.bf16.gmra.mrb[0].mxu0 %v406
  %v442 = vpop.f32.mrb[0].mxu0
  %v443 = vadd.f32 %v404, %v442
  %v444 = vpop.f32.mrb[0].mxu0
  %v445 = vpop.f32.mrb[0].mxu0
  %v446 = vpop.f32.mrb[0].mxu0
  %447 = vdwg.mxu0
  %v448 = vld [vmem:[%s3 + $0xcc] sm:$0x1]
  %v449 = vld [vmem:[%s3 + $0xcd] sm:$0x1]
  %v450 = vsel %vm66, %v443, 0.0
  %451 = vadd.xlane.f32.xlu0 %v450
  %v452 = vpop.xlane.xlu0 %451
  %v453 = vmul.f32 %v452, %v37
  %v454 = vsub.f32 %v443, %v453
  %v455 = vmul.f32 %v454, %v454
  %v456 = vsel %vm66, %v455, 0.0
  %457 = vadd.xlane.f32.xlu0 %v456
  %v458 = vpop.xlane.xlu0 %457
  %v459 = vmul.f32 %v458, %v37
  %v460 = vadd.f32 %v459, 1e-05
  %v461 = vrsqrt.pop %v460
  %v462 = vmul.f32 %v454, %v461
  %v463 = vlaneseq
  %v464 = vshrl.u32 %v463, 7
  %v465 = vsub.s32 0, %v464
  %v466 = vrot.slane %v448, %v465
  %v467 = vmul.f32 %v462, %v466
  %v468 = vlaneseq
  %v469 = vshrl.u32 %v468, 7
  %v470 = vsub.s32 0, %v469
  %v471 = vrot.slane %v449, %v470
  %v472 = vadd.f32 %v467, %v471
  %v474 = vsel %vm66, %v246, 0
  %v477 = vsel %vm66, %v472, 0
  %479 = vmatprep.subr.mxu0 0.0
  %480 = vmatpush1.xpose.msra.mxu0 %v477
  %481 = vmatprep.subr.mxu0 0.0
  %482 = vmatpush1.xpose.msra.mxu0 0.0
  %483 = vmatprep.subr.mxu0 0.0
  %484 = vmatpush1.xpose.msra.mxu0 0.0
  %485 = vmatprep.subr.mxu0 0.0
  %486 = vmatpush1.xpose.msra.mxu0 0.0
  %487 = vmatprep.subr.mxu0 0.0
  %488 = vmatpush1.xpose.msra.mxu0 0.0
  %489 = vmatprep.subr.mxu0 0.0
  %490 = vmatpush1.xpose.msra.mxu0 0.0
  %491 = vmatprep.subr.mxu0 0.0
  %492 = vmatpush1.xpose.msra.mxu0 0.0
  %493 = vmatprep.subr.mxu0 0.0
  %494 = vmatpush1.xpose.msra.mxu0 0.0
  %495 = vmatprep.subr.mxu0 0.0
  %496 = vmatpush1.xpose.msra.mxu0 0.0
  %497 = vmatprep.subr.mxu0 0.0
  %498 = vmatpush1.xpose.msra.mxu0 0.0
  %499 = vmatprep.subr.mxu0 0.0
  %500 = vmatpush1.xpose.msra.mxu0 0.0
  %501 = vmatprep.subr.mxu0 0.0
  %502 = vmatpush1.xpose.msra.mxu0 0.0
  %503 = vmatprep.subr.mxu0 0.0
  %504 = vmatpush1.xpose.msra.mxu0 0.0
  %505 = vmatprep.subr.mxu0 0.0
  %506 = vmatpush1.xpose.msra.mxu0 0.0
  %507 = vmatprep.subr.mxu0 0.0
  %508 = vmatpush1.xpose.msra.mxu0 0.0
  %509 = vmatprep.subr.mxu0 0.0
  %510 = vmatpush1.xpose.msra.mxu0 0.0
  %511 = vmatprep.subr.mxu0 0.0
  %512 = vmatpush1.xpose.msra.mxu0 0.0
  %513 = vmatprep.subr.mxu0 0.0
  %514 = vmatpush1.xpose.msra.mxu0 0.0
  %515 = vmatprep.subr.mxu0 0.0
  %516 = vmatpush1.xpose.msra.mxu0 0.0
  %517 = vmatprep.subr.mxu0 0.0
  %518 = vmatpush1.xpose.msra.mxu0 0.0
  %519 = vmatprep.subr.mxu0 0.0
  %520 = vmatpush1.xpose.msra.mxu0 0.0
  %521 = vmatprep.subr.mxu0 0.0
  %522 = vmatpush1.xpose.msra.mxu0 0.0
  %523 = vmatprep.subr.mxu0 0.0
  %524 = vmatpush1.xpose.msra.mxu0 0.0
  %525 = vmatprep.subr.mxu0 0.0
  %526 = vmatpush1.xpose.msra.mxu0 0.0
  %527 = vmatprep.subr.mxu0 0.0
  %528 = vmatpush1.xpose.msra.mxu0 0.0
  %529 = vmatprep.subr.mxu0 0.0
  %530 = vmatpush1.xpose.msra.mxu0 0.0
  %531 = vmatprep.subr.mxu0 0.0
  %532 = vmatpush1.xpose.msra.mxu0 0.0
  %533 = vmatprep.subr.mxu0 0.0
  %534 = vmatpush1.xpose.msra.mxu0 0.0
  %535 = vmatprep.subr.mxu0 0.0
  %536 = vmatpush1.xpose.msra.mxu0 0.0
  %537 = vmatprep.subr.mxu0 0.0
  %538 = vmatpush1.xpose.msra.mxu0 0.0
  %539 = vmatprep.subr.mxu0 0.0
  %540 = vmatpush1.xpose.msra.mxu0 0.0
  %541 = vmatprep.subr.mxu0 0.0
  %542 = vmatpush1.xpose.msra.mxu0 0.0
  %543 = vmatprep.mubr.f32.mxu0 0.0
  %544 = vmatmul.mubr.f32.gmra.mrb[0].mxu0 %v474
  %v545 = vpop.f32.mrb[0].mxu0
  %v546 = vadd.f32 0.0, %v545
  %v547 = vpop.f32.mrb[0].mxu0
  %548 = vdwg.mxu0
  %vm549 = vcmask 60416
  %v550 = vsel %vm549, %v546, -inf
  %551 = vmax.xlane.f32.xlu0 %v550
  %v552 = vpop.xlane.xlu0 %551
  %v553 = vsub.f32 %v546, %v552
  %v554 = vmul.f32 %v553, 1.442695
  %v555 = vpow.pop %v554
  %v556 = vsel %vm549, %v555, 0.0
  %557 = vadd.xlane.f32.xlu0 %v556
  %v558 = vpop.xlane.xlu0 %557
  %v559 = vrcp.pop %v558
  %v560 = vmul.f32 %v555, %v559
  %v561 = vld [vmem:[%s2] sm:$0xf]
  %v562 = vmul.f32 %v560, %v561
  %v563 = vsel %vm549, %v562, 0.0
  %564 = vadd.xlane.f32.xlu0 %v563
  %v565 = vpop.xlane.xlu0 %564
  %v566 = vsel %vm549, %v561, 0.0
  %567 = vadd.xlane.f32.xlu0 %v566
  %v568 = vpop.xlane.xlu0 %567
  %v569 = vrcp.pop 8.0
  %v570 = vmul.f32 %v568, %v569
  %v571 = vsub.f32 %v561, %v570
  %v572 = vmul.f32 %v571, %v571
  %v573 = vsel %vm549, %v572, 0.0
  %574 = vadd.xlane.f32.xlu0 %v573
  %v575 = vpop.xlane.xlu0 %574
  %v576 = vrcp.pop 7.0
  %v577 = vmul.f32 %v575, %v576
  %v578 = vrsqrt.pop %v577
  %v579 = vmul.f32 %v577, %v578
  %vm580 = vcmp.eq.f32.partialorder %v577, inf
  %v581 = vsel %vm580, %v577, %v579
  %vm582 = vcmp.eq.f32.partialorder %v577, 0.0
  %v583 = vand.u32 %v577, 2147483648
  %v584 = vsel %vm582, %v583, %v581
  %v585 = vld [vmem:[%s3 + $0xce] sm:$0x1]
  %v586 = vld [vmem:[%s3 + $0xcf] sm:$0x1]
  %v587 = vld [vmem:[%s3 + $0xd0] sm:$0x1]
  %v588 = vld [vmem:[%s3 + $0xd1] sm:$0x1]
  %v589 = vld [vmem:[%s3 + $0xd2] sm:$0x1]
  %v590 = vld [vmem:[%s3 + $0xd3] sm:$0x1]
  %v591 = vlaneseq
  %v592 = vshrl.u32 %v591, 7
  %v593 = vsub.s32 0, %v592
  %v594 = vrot.slane %v585, %v593
  %v595 = vmul.f32 %v570, %v594
  %v596 = vlaneseq
  %v597 = vshrl.u32 %v596, 7
  %v598 = vsub.s32 0, %v597
  %v599 = vrot.slane %v586, %v598
  %v600 = vmul.f32 %v584, %v599
  %v601 = vadd.f32 %v595, %v600
  %v602 = vlaneseq
  %v603 = vshrl.u32 %v602, 7
  %v604 = vsub.s32 0, %v603
  %v605 = vrot.slane %v587, %v604
  %v606 = vadd.f32 %v601, %v605
  %v607 = vmax.f32 %v606, 0.0
  %v608 = vlaneseq
  %v609 = vshrl.u32 %v608, 7
  %v610 = vsub.s32 0, %v609
  %v611 = vrot.slane %v588, %v610
  %v612 = vmul.f32 %v607, %v611
  %vm613 = vcmask 76800
  %v614 = vsel %vm613, %v612, 0.0
  %615 = vadd.xlane.f32.xlu0 %v614
  %v616 = vpop.xlane.xlu0 %615
  %v617 = vlaneseq
  %v618 = vshrl.u32 %v617, 7
  %v619 = vsub.s32 0, %v618
  %v620 = vrot.slane %v590, %v619
  %v621 = vadd.f32 %v616, %v620
  %v622 = vlaneseq
  %v623 = vshrl.u32 %v622, 7
  %v624 = vsub.s32 0, %v623
  %v625 = vrot.slane %v589, %v624
  %v626 = vmul.f32 %v607, %v625
  %v627 = vsel %vm613, %v626, 0.0
  %628 = vadd.xlane.f32.xlu0 %v627
  %v629 = vpop.xlane.xlu0 %628
  %v630 = vadd.f32 %v629, %v620
  %v631 = vmax.f32 %v621, 0.0
  %v632 = vand.u32 2147483647, %v621
  %v633 = vsub.f32 0.0, %v632
  %v634 = vmul.f32 %v633, 1.442695
  %v635 = vpow.pop %v634
  %v636 = vadd.f32 %v635, 1.0
  %v637 = vlog2.pop %v636
  %v638 = vmul.f32 %v637, 0.6931472
  %v639 = vmul.f32 -0.5, %v635
  %v640 = vadd.f32 %v639, 1.0
  %v641 = vmul.f32 %v640, %v635
  %v642 = vand.u32 2147483647, %v635
  %vm643 = vcmp.lt.f32.partialorder %v642, 0.0004427343
  %v644 = vsel %vm643, %v641, %v638
  %v645 = vadd.f32 %v631, %v644
  %v646 = vmax.f32 %v645, 0.01
  %v647 = vmin.f32 %v646, 10.0
  %v648 = vtanh.pop %v630
  %v649 = vmax.f32 %v565, 0.0001
  %v650 = vmin.f32 %v649, 0.9999
  %v651 = vlog2.pop %v650
  %v652 = vmul.f32 %v651, 0.6931472
  %v653 = vsub.f32 0.0, %v650
  %v654 = vadd.f32 %v653, 1.0
  %v655 = vlog2.pop %v654
  %v656 = vmul.f32 %v655, 0.6931472
  %v657 = vmul.f32 -0.5, %v653
  %v658 = vadd.f32 %v657, 1.0
  %v659 = vmul.f32 %v658, %v653
  %v660 = vand.u32 2147483647, %v653
  %vm661 = vcmp.lt.f32.partialorder %v660, 0.0004427343
  %v662 = vsel %vm661, %v659, %v656
  %v663 = vsub.f32 %v652, %v662
  %v664 = vrcp.pop %v647
  %v665 = vmul.f32 %v663, %v664
  %667 = vrot.lane.b32.xlu0 %v648, 127
  %v668 = vpop.permute.xlu0 %667
  %v670 = vadd.f32 %v665, %v668
  %v671 = vsub.f32 0.0, %v670
  %v672 = vmul.f32 %v671, 1.442695
  %v673 = vpow.pop %v672
  %v674 = vadd.f32 %v673, 1.0
  %v675 = vrcp.pop %v674
  %v676 = vmul.f32 1.0, %v675
  %vm677 = vcmask 3072
  %678 = vst.msk [vmem:[%s4] sm:$0xf] %vm677, %v676
  // Predicated region
  $region18: #{tpu_custom_call.1} parent=0 // pred_check
    _
  $region19: #{tpu_custom_call.1} parent=0 // pred_check_branch
    %680 = sbr.rel (0) target = $region21
  $region20: #{tpu_custom_call.1} parent=0 // pred_region
    _
  $region21: #{tpu_custom_call.1} parent=0 // pred_fallthru
    _
  // Predicated region
  $region22: #{tpu_custom_call.1} parent=0 // pred_check
    _
  $region23: #{tpu_custom_call.1} parent=0 // pred_check_branch
    %682 = sbr.rel (0) target = $region25
  $region24: #{tpu_custom_call.1} parent=0 // pred_region
    _
  $region25: #{tpu_custom_call.1} parent=0 // pred_fallthru
    _

</llo_original>
